<compile_context>
chip_gen: v6e
topology: v6e:2x2x1
jax: 0.10.0
libtpu: 0.0.40
codegen_flags: <defaults>
</compile_context>

<pallas_src>
import functools

import jax
import jax.numpy as jnp
from jax import lax
from jax.experimental import pallas as pl
from jax.experimental.pallas import tpu as pltpu


def _round_up(v, m):
    return -(-v // m) * m


def _round_down(v, m):
    return (v // m) * m


def _l_color_sum_kernel(x_ref, out_ref, acc_ref, *, n_total, tile_n,
                        tiles_per_split, needs_mask):
    # x_ref  : (R, TN)      one lane tile of the flattened image, R = 3*B
    # out_ref: (1, R, 1)    per-split channel sums (resident across t)
    # acc_ref: (R, TN)      persistent elementwise accumulator (f32)
    s = pl.program_id(0)
    t = pl.program_id(1)

    @pl.when(t == 0)
    def _init():
        acc_ref[...] = jnp.zeros_like(acc_ref)

    x = x_ref[...].astype(jnp.float32)  # f32 accumulation even for bf16 input
    if needs_mask:
        # Un-clamped block index; redundant / partial tail tiles contribute 0.
        blk = s * tiles_per_split + t
        col = blk * tile_n + lax.broadcasted_iota(jnp.int32, x.shape, 1)
        x = jnp.where(col < n_total, x, 0.0)

    acc_ref[...] += x  # pure VPU work, hidden under the next tile's DMA

    @pl.when(t == tiles_per_split - 1)
    def _finalize():
        # One XLU cross-lane reduce per split.
        sums = jnp.sum(acc_ref[...], axis=-1, keepdims=True)  # (R, 1)
        out_ref[...] = sums[None, :, :].astype(out_ref.dtype)


def _vmem_budget_bytes():
    """(big-buffer budget, vmem_limit) per TPU generation."""
    cap = 128 * 1024 * 1024
    try:
        info = pltpu.get_tpu_info()
        cap = int(getattr(info, "vmem_capacity_bytes", cap))
    except Exception:
        pass
    if cap <= 64 * 1024 * 1024:
        # v7x: 64 MiB VMEM / ~3.2 TB/s HBM -> bigger tiles amortize the
        # ~0.35us per-grid-step overhead.
        return 24 * 1024 * 1024, 30 * 1024 * 1024
    # v5e / v6e: ~4 MiB-class per-buffer tiles already amortize the step
    # overhead; stay under v5e's 16 MiB default scoped VMEM.
    return 12 * 1024 * 1024, 16 * 1024 * 1024


def _choose_tiling(n_rows, n_cols, itemsize):
    """Pick the lane-tile size TN and a matching vmem_limit_bytes."""
    budget, vmem_limit = _vmem_budget_bytes()
    padded_rows = _round_up(n_rows, 8)
    # VMEM per lane column: 2x double-buffered input tile + 1x f32 accumulator.
    bytes_per_col = padded_rows * (2 * itemsize + 4)

    tn = budget // bytes_per_col
    if tn >= 1024:
        tn = _round_down(tn, 1024)
    else:
        tn = max(128, _round_down(tn, 128))

    input_bytes = n_rows * n_cols * itemsize
    if n_cols <= tn:
        if input_bytes > 2 * 1024 * 1024 and n_cols >= 256:
            # Never let the reduction collapse to a single grid step on a
            # non-trivial input: >=2 steps so DMA(i+1) overlaps compute(i).
            tn = min(tn, max(128, _round_up((n_cols + 1) // 2, 128)))
        else:
            tn = n_cols  # tiny input: one full-extent block (unit-test shapes)

    vmem_limit = max(vmem_limit, bytes_per_col * tn + (4 << 20))
    return tn, int(vmem_limit)


def l_color(x, *, _tile_override=None):
    """x: (B, 3, H, W) -> (B, 1, 1, 1), matching the PyTorch L_color.forward."""
    B, C, H, W = x.shape
    assert C == 3, "L_color splits the channel dim into r,g,b (C must be 3)"
    N = H * W
    R = B * 3

    xf = x.reshape(R, N)  # contiguous reshape: free, lane-dense layout

    itemsize = jnp.dtype(x.dtype).itemsize
    tn, vmem_limit = _choose_tiling(R, N, itemsize)
    if _tile_override is not None:  # test hook: force the multi-tile path
        tn = min(int(_tile_override), N)

    nblocks = pl.cdiv(N, tn)
    nsplit = 2 if nblocks >= 2 else 1          # 2-way split feeds both v7x TCs
    tps = pl.cdiv(nblocks, nsplit)             # tiles per split (grid padded)
    needs_mask = (nsplit * tps * tn) != N      # tail / padded blocks present

    kernel = functools.partial(
        _l_color_sum_kernel,
        n_total=N, tile_n=tn, tiles_per_split=tps, needs_mask=needs_mask)

    grid_spec = pltpu.PrefetchScalarGridSpec(
        num_scalar_prefetch=0,
        grid=(nsplit, tps),
        in_specs=[pl.BlockSpec(
            (R, tn),
            # Clamp so padded grid steps re-read the last valid block (their
            # contribution is masked to zero in the kernel).
            lambda s, t: (0, jnp.minimum(s * tps + t, nblocks - 1)))],
        out_specs=pl.BlockSpec((1, R, 1), lambda s, t: (s, 0, 0)),
        scratch_shapes=[pltpu.VMEM((R, tn), jnp.float32)],
    )

    partial_sums = pl.pallas_call(
        kernel,
        out_shape=jax.ShapeDtypeStruct((nsplit, R, 1), jnp.float32),
        grid_spec=grid_spec,
        compiler_params=pltpu.CompilerParams(
            dimension_semantics=("parallel", "arbitrary"),
            vmem_limit_bytes=vmem_limit,
        ),
    )(xf)

    # Tiny O(B) epilogue: combine the split partial sums and form k.
    sums = partial_sums.reshape(nsplit, B, 3).sum(axis=0)            # (B, 3)
    means = sums * (1.0 / float(N))                                   # channel means
    denom = jnp.sum(means, axis=1, keepdims=True) + 0.0001            # (B, 1)
    ratios = means / denom
    k = jnp.sum((ratios - 1.0 / 3.0) ** 2, axis=1, keepdims=True)     # (B, 1)
    # TODO(synk): self.pool = nn.AvgPool2d(4) is defined in __init__ but never
    # used in forward, so it is intentionally not implemented.
    return k.reshape(B, 1, 1, 1).astype(x.dtype)


def _reference(x):
    mean_rgb = jnp.mean(x.astype(jnp.float32), axis=(2, 3), keepdims=True)
    mr = mean_rgb[:, 0:1]
    mg = mean_rgb[:, 1:2]
    mb = mean_rgb[:, 2:3]
    s = mr + mg + mb + 0.0001
    r, g, b = mr / s, mg / s, mb / s
    return (r - 1.0 / 3.0) ** 2 + (g - 1.0 / 3.0) ** 2 + (b - 1.0 / 3.0) ** 2


if __name__ == "__main__":
    key = jax.random.PRNGKey(0)
    k1, k2 = jax.random.split(key)

    # Small shape implied by the module (channel dim must be 3 for r/g/b).
    B, C, H, W = 2, 3, 16, 16
    x = jax.random.uniform(k1, (B, C, H, W), dtype=jnp.float32)
    out = jax.block_until_ready(l_color(x))
    ref = _reference(x)
    assert out.shape == (B, 1, 1, 1)
    assert jnp.allclose(out, ref, atol=1e-5, rtol=1e-5)

    # Exercise the multi-tile / 2-way-split / masked-tail path (the code path
    # large images take) at a tiny size by forcing a small lane tile.
    x2 = jax.random.uniform(k2, (2, 3, 16, 20), dtype=jnp.float32)
    out2 = jax.block_until_ready(l_color(x2, _tile_override=128))
    ref2 = _reference(x2)
    assert out2.shape == (2, 1, 1, 1)
    assert jnp.allclose(out2, ref2, atol=1e-5, rtol=1e-5)

    print("KERNEL_OK")
</pallas_src>

<mosaic_0001>
module attributes {stable_mosaic.version = 11 : i64} {
  func.func @_l_color_sum_kernel(%arg0: i32, %arg1: i32, %arg2: memref<6x256xf32, #tpu.memory_space<vmem>>, %arg3: memref<1x6x1xf32, #tpu.memory_space<vmem>>, %arg4: memref<6x256xf32, #tpu.memory_space<vmem>>) attributes {dimension_semantics = [#tpu.dimension_semantics<parallel>, #tpu.dimension_semantics<arbitrary>], iteration_bounds = array<i64: 1, 1>, scalar_prefetch = 0 : i64, scratch_operands = 1 : i64, tpu.core_type = #tpu.core_type<tc>, window_params = [{transform_indices = @transform_0, window_bounds = array<i64: 6, 256>}, {transform_indices = @transform_1, window_bounds = array<i64: 1, 6, 1>}]} {
    %c0_i32 = arith.constant 0 : i32
    %0 = arith.cmpi eq, %arg1, %c0_i32 : i32
    %1 = arith.extui %0 : i1 to i32
    %c0_i32_0 = arith.constant 0 : i32
    %2 = arith.cmpi ne, %1, %c0_i32_0 : i32
    scf.if %2 {
      %cst = arith.constant 0.000000e+00 : f32
      %10 = vector.broadcast %cst : f32 to vector<6x256xf32>
      %c0_8 = arith.constant 0 : index
      %c0_9 = arith.constant 0 : index
      %11 = vector.load %arg4[%c0_8, %c0_9] : memref<6x256xf32, #tpu.memory_space<vmem>>, vector<6x256xf32>
      tpu.vector_store %arg4[%c0_8, %c0_9], %10 {strides = array<i32>} : memref<6x256xf32, #tpu.memory_space<vmem>>, vector<6x256xf32>,
    } else {
    }
    %c0 = arith.constant 0 : index
    %c0_1 = arith.constant 0 : index
    %3 = vector.load %arg2[%c0, %c0_1] : memref<6x256xf32, #tpu.memory_space<vmem>>, vector<6x256xf32>
    %c0_2 = arith.constant 0 : index
    %c0_3 = arith.constant 0 : index
    %4 = vector.load %arg4[%c0_2, %c0_3] : memref<6x256xf32, #tpu.memory_space<vmem>>, vector<6x256xf32>
    %5 = arith.addf %4, %3 : vector<6x256xf32>
    %c0_4 = arith.constant 0 : index
    %c0_5 = arith.constant 0 : index
    %6 = vector.load %arg4[%c0_4, %c0_5] : memref<6x256xf32, #tpu.memory_space<vmem>>, vector<6x256xf32>
    tpu.vector_store %arg4[%c0_4, %c0_5], %5 {strides = array<i32>} : memref<6x256xf32, #tpu.memory_space<vmem>>, vector<6x256xf32>,
    %c0_i32_6 = arith.constant 0 : i32
    %7 = arith.cmpi eq, %arg1, %c0_i32_6 : i32
    %8 = arith.extui %7 : i1 to i32
    %c0_i32_7 = arith.constant 0 : i32
    %9 = arith.cmpi ne, %8, %c0_i32_7 : i32
    scf.if %9 {
      %c0_8 = arith.constant 0 : index
      %c0_9 = arith.constant 0 : index
      %10 = vector.load %arg4[%c0_8, %c0_9] : memref<6x256xf32, #tpu.memory_space<vmem>>, vector<6x256xf32>
      %cst = arith.constant dense<0.000000e+00> : vector<6xf32>
      %11 = vector.multi_reduction <add>, %10, %cst [1] : vector<6x256xf32> to vector<6xf32>
      %12 = vector.shape_cast %11 : vector<6xf32> to vector<6x1xf32>
      %13 = vector.shape_cast %12 : vector<6x1xf32> to vector<1x6x1xf32>
      %c0_10 = arith.constant 0 : index
      %c0_11 = arith.constant 0 : index
      %c0_12 = arith.constant 0 : index
      %14 = vector.load %arg3[%c0_10, %c0_11, %c0_12] : memref<1x6x1xf32, #tpu.memory_space<vmem>>, vector<1x6x1xf32>
      tpu.vector_store %arg3[%c0_10, %c0_11, %c0_12], %13 {strides = array<i32>} : memref<1x6x1xf32, #tpu.memory_space<vmem>>, vector<1x6x1xf32>,
    } else {
    }
    return
  }
  func.func @transform_0(%arg0: i32, %arg1: i32) -> (i32, i32) {
    %c1_i32 = arith.constant 1 : i32
    %0 = arith.muli %arg0, %c1_i32 : i32
    %1 = arith.addi %0, %arg1 : i32
    %c0_i32 = arith.constant 0 : i32
    %2 = arith.minsi %1, %c0_i32 : i32
    %c0_i32_0 = arith.constant 0 : i32
    %c0_i32_1 = arith.constant 0 : i32
    return %c0_i32_0, %2 : i32, i32
  }
  func.func @transform_1(%arg0: i32, %arg1: i32) -> (i32, i32, i32) {
    %c0_i32 = arith.constant 0 : i32
    %c0_i32_0 = arith.constant 0 : i32
    %c0_i32_1 = arith.constant 0 : i32
    return %arg0, %c0_i32, %c0_i32_0 : i32, i32, i32
  }
}

</mosaic_0001>

<llo_original>
// kernel: tpu_custom_call.1
$region0: #{tpu_custom_call.1}
  #allocation0 [shape = 'u32[]', space=smem, size = 0x4, offset = 0x4, fixed_abs, tag = 'smem constant byte address 0x4 - core index']
  #allocation1 [shape = 'u32[144,128]{1,0:T(1,128)}', space=vmem, size = 0x12000, scoped, tag = 'internal scratch']
  #allocation2 [shape = 'f32[6,256]{1,0:T(8,128)}', space=vmem, size = 0x2000, scoped, tag = 'scratch operand']
  %s0 = inlined_call_operand.hbm [shape: f32[6,256], index: 0, kind: input, shape index: {}]
  %s1 = inlined_call_operand.vmem [shape: f32[1,6,1], index: 1, kind: output, shape index: {}]
  %s2 = sld [smem:[#allocation0]]
  $region26: #{tpu_custom_call.1} parent=0
    _
  %s4 = ssub.s32 1, %s2
  %s5 = scalar_select 0, %s4, %s2
  $region1: #{tpu_custom_call.1} parent=0
    #allocation3 [shape = 'u8[8192]{0}', space=vmem, size = 0x2000, scoped, tag = 'input window, operand 0, single buffered']
    #allocation4 [shape = 's32[1]{0}', space=sflag, size = 0x4, scoped, tag = 'scoped memory for tpu_custom_call.1']
    %6 = vsyncpa [#allocation4], 0
    // Predicated region
    $region2: #{tpu_custom_call.1} parent=1 // pred_check
      _
    $region3: #{tpu_custom_call.1} parent=1 // pred_check_branch
      %8 = sbr.rel (0) target = $region5
    $region4: #{tpu_custom_call.1} parent=1 // pred_region
      %s9 = sadd.s32 0, 0
      %p10 = scmp.lt.s32.totalorder %s9, 0
      %s11 = scalar_select %p10, %s9, 0
      %s12 = smul.u32 2, %s11
      %s14 = ssub.s32 256, 256
      %15 = vsyncadd [#allocation4], %s14
      %s16 = smul.addr %s12, 128
      %s17 = scalar_lea.hbm %s0, %s16
      %s19 = sshll.u32 [#allocation3], 4
      %s20 = int_to_ptr.vmem [resolvable:$true] %s19
      %22 = dma.hbm_to_vmem [thread:$0]  %s17, 256, %s20, [#allocation4]
    $region5: #{tpu_custom_call.1} parent=1 // pred_fallthru
      _
    // Predicated region
    $region6: #{tpu_custom_call.1} parent=1 // pred_check
      _
    $region7: #{tpu_custom_call.1} parent=1 // pred_check_branch
      %24 = sbr.rel (0) target = $region9
    $region8: #{tpu_custom_call.1} parent=1 // pred_region
      %25 = dma.done [#allocation4], 256
    $region9: #{tpu_custom_call.1} parent=1 // pred_fallthru
      _
    %s26 = sadd.s32 0, 0
    %p27 = scmp.lt.s32.totalorder %s26, 0
    %s28 = scalar_select %p27, %s26, 0
    %s29 = smul.u32 2, %s28
    %p30 = scmp.eq.s32.totalorder 0, 0
    // Predicated region
    $region10: #{tpu_custom_call.1} parent=1 // pred_check
      %p31 = pneg %p30
    $region11: #{tpu_custom_call.1} parent=1 // pred_check_branch
      %33 = sbr.rel (%p31) target = $region13
    $region12: #{tpu_custom_call.1} parent=1 // pred_region
      %34 = vst [vmem:[#allocation2] sm:$0x3f] 0.0
      %35 = vst [vmem:[#allocation2 + $0x8] sm:$0x3f] 0.0
    $region13: #{tpu_custom_call.1} parent=1 // pred_fallthru
      _
    %v36 = vld [vmem:[#allocation3] sm:$0x3f]
    %v37 = vld [vmem:[#allocation3 + $0x8] sm:$0x3f]
    %v38 = vld [vmem:[#allocation2] sm:$0x3f]
    %v39 = vld [vmem:[#allocation2 + $0x8] sm:$0x3f]
    %v40 = vadd.f32 %v38, %v36
    %v41 = vadd.f32 %v39, %v37
    %42 = vst [vmem:[#allocation2] sm:$0x3f] %v40
    %43 = vst [vmem:[#allocation2 + $0x8] sm:$0x3f] %v41
    // Predicated region
    $region14: #{tpu_custom_call.1} parent=1 // pred_check
      %p44 = pneg %p30
    $region15: #{tpu_custom_call.1} parent=1 // pred_check_branch
      %46 = sbr.rel (%p44) target = $region17
    $region16: #{tpu_custom_call.1} parent=1 // pred_region
      %v47 = vld [vmem:[#allocation2] sm:$0x3f]
      %v48 = vld [vmem:[#allocation2 + $0x8] sm:$0x3f]
      %vm49 = vcmask 1045504
      %v50 = vsel %vm49, %v47, 0.0
      %v51 = vsel %vm49, %v48, 0.0
      %v52 = vadd.f32 %v50, %v51
      %53 = vadd.xlane.f32.xlu0 %v52
      %v54 = vpop.xlane.xlu0 %53
      %vm55 = vcmask 5120
      %56 = vst.msk [vmem:[%s1] sm:$0x3f] %vm55, %v54
    $region17: #{tpu_custom_call.1} parent=1 // pred_fallthru
      _
    // Predicated region
    $region18: #{tpu_custom_call.1} parent=1 // pred_check
      _
    $region19: #{tpu_custom_call.1} parent=1 // pred_check_branch
      %58 = sbr.rel (0) target = $region21
    $region20: #{tpu_custom_call.1} parent=1 // pred_region
      _
    $region21: #{tpu_custom_call.1} parent=1 // pred_fallthru
      _
    // Predicated region
    $region22: #{tpu_custom_call.1} parent=1 // pred_check
      _
    $region23: #{tpu_custom_call.1} parent=1 // pred_check_branch
      %60 = sbr.rel (0) target = $region25
    $region24: #{tpu_custom_call.1} parent=1 // pred_region
      _
    $region25: #{tpu_custom_call.1} parent=1 // pred_fallthru
      _
    %61 = vsyncpa [#allocation4], 1

</llo_original>
